<compile_context>
chip_gen: v7x
topology: tpu7x:2x2x1
jax: 0.10.0
libtpu: 0.0.40
codegen_flags: <defaults>
</compile_context>

<pallas_src>
import functools

import jax
import jax.numpy as jnp
from jax.experimental import pallas as pl
from jax.experimental.pallas import tpu as pltpu


def _cheb_conv_kernel(x_ref, sat_t_ref, cheb_t_ref, theta_bd_ref, out_ref,
                      *, use_bf16_matmul):
    # x_ref:        (Bt, N, T*F_in)       graph signal, lanes ordered (t, f)
    # sat_t_ref:    (Bt, N, N)            spatial attention, pre-transposed
    # cheb_t_ref:   (K, N, N)             Chebyshev polynomials, pre-transposed
    # theta_bd_ref: (K, T*F_in, T*F_out)  block-diagonal Theta (diag block t = Theta_k)
    # out_ref:      (Bt, N, T*F_out)      output, lanes ordered (t, o)
    Bt, N, _ = x_ref.shape
    K = cheb_t_ref.shape[0]
    TFo = theta_bd_ref.shape[2]
    mxu_dtype = jnp.bfloat16 if use_bf16_matmul else jnp.float32

    # Hoist grid-constant operands out of the (unrolled) loops.
    cheb_t = cheb_t_ref[...]                               # (K, N, N)
    theta_bd = theta_bd_ref[...].astype(mxu_dtype)         # (K, T*F_in, T*F_out)

    for b in range(Bt):                                    # Bt small & static -> unrolled
        x = x_ref[b].astype(mxu_dtype)                     # (N, T*F_in)
        sat_t = sat_t_ref[b]                               # (N, N) == S_b^T
        acc = jnp.zeros((N, TFo), jnp.float32)             # lane-dense f32 accumulator
        for k in range(K):                                 # K small & static -> unrolled
            # Stage 1: graph aggregation for all T time steps at once.
            #   z_k = (T_k . S_b)^T @ X  ==  (T_k^T . S_b^T) @ X   (no transpose needed)
            a_k = (cheb_t[k] * sat_t).astype(mxu_dtype)    # (N, N), amortized over T
            z_k = jnp.dot(a_k, x,
                          preferred_element_type=jnp.float32)        # (N, T*F_in)
            # Stage 2: feature transform with block-diagonal Theta.  Result is
            # already (N, T*F_out) lane-dense: no gathers, no masked stores.
            acc = acc + jnp.dot(z_k.astype(mxu_dtype), theta_bd[k],
                                preferred_element_type=jnp.float32)  # (N, T*F_out)
        out_ref[b] = jnp.maximum(acc, 0.0).astype(out_ref.dtype)     # ReLU


def cheb_conv_with_sat(x, spatial_attention, cheb_polys, theta,
                       *, use_bf16_matmul=False, batch_block=1):
    """
    x:                 (B, N, F_in, T)   float32
    spatial_attention: (B, N, N)         float32
    cheb_polys:        (K, N, N)         float32
    theta:             (K, F_in, F_out)  float32
    returns:           (B, N, F_out, T)  float32
    """
    B, N, F_in, T = x.shape
    K, _, F_out = theta.shape
    assert B % batch_block == 0, "batch_block must divide B"

    # Lanes ordered (t, f): one pass over x in XLA, so the whole T axis rides
    # along the matmul lane dimension inside the kernel.
    x_flat = jnp.transpose(x, (0, 1, 3, 2)).reshape(B, N, T * F_in)
    # (A . S)^T == A^T . S^T: pre-transpose the small operands once.
    sat_t = jnp.transpose(spatial_attention, (0, 2, 1))
    cheb_t = jnp.transpose(cheb_polys, (0, 2, 1))
    # Block-diagonal Theta: theta_bd[k, t*F_in + f, t*F_out + o] = theta[k, f, o].
    eye_t = jnp.eye(T, dtype=theta.dtype)
    theta_bd = jnp.einsum('tu,kfo->ktfuo', eye_t, theta).reshape(
        K, T * F_in, T * F_out)

    # Advisory cost estimate for the XLA scheduler.
    itemsize = jnp.dtype(x.dtype).itemsize
    flops = (2 * B * K * N * N * (T * F_in)
             + 2 * B * K * N * (T * F_in) * (T * F_out))
    bytes_accessed = itemsize * (x_flat.size + sat_t.size + cheb_t.size
                                 + theta_bd.size + B * N * T * F_out)

    # Explicit VMEM budget: double-buffered per-batch blocks + constant blocks
    # + live temporaries, with headroom.  Floors at 32 MiB (raises v5e's 16 MiB
    # scoped default), capped well under physical VMEM on all generations.
    block_bytes = 4 * (batch_block * N * (T * F_in)          # x block
                       + batch_block * N * (T * F_out)       # out block
                       + batch_block * N * N                 # sat block
                       + K * N * N                           # cheb (grid-constant)
                       + K * (T * F_in) * (T * F_out)        # theta_bd (grid-constant)
                       + N * (T * F_in) + N * (T * F_out) + N * N)  # temporaries
    vmem_limit = int(min(max(3 * block_bytes, 32 * 1024 * 1024),
                         60 * 1024 * 1024))

    kernel = functools.partial(_cheb_conv_kernel,
                               use_bf16_matmul=use_bf16_matmul)

    out_flat = pl.pallas_call(
        kernel,
        out_shape=jax.ShapeDtypeStruct((B, N, T * F_out), x.dtype),
        grid=(B // batch_block,),
        in_specs=[
            pl.BlockSpec((batch_block, N, T * F_in), lambda b: (b, 0, 0)),
            pl.BlockSpec((batch_block, N, N), lambda b: (b, 0, 0)),
            # Grid-constant operands: constant index maps -> DMA'd only once.
            pl.BlockSpec((K, N, N), lambda b: (0, 0, 0)),
            pl.BlockSpec((K, T * F_in, T * F_out), lambda b: (0, 0, 0)),
        ],
        out_specs=pl.BlockSpec((batch_block, N, T * F_out), lambda b: (b, 0, 0)),
        compiler_params=pltpu.CompilerParams(
            dimension_semantics=("parallel",),
            vmem_limit_bytes=vmem_limit),
        cost_estimate=pl.CostEstimate(
            flops=int(flops), transcendentals=0,
            bytes_accessed=int(bytes_accessed)),
    )(x_flat, sat_t, cheb_t, theta_bd)

    # Back to PyTorch output layout (B, N, F_out, T).
    return jnp.transpose(out_flat.reshape(B, N, T, F_out), (0, 1, 3, 2))


def _reference(x, spatial_attention, cheb_polys, theta):
    # Pure-JAX reference mirroring the PyTorch loop, for validation.
    B, N, F_in, T = x.shape
    K, _, F_out = theta.shape
    hi = jax.lax.Precision.HIGHEST
    outs = []
    for t in range(T):
        gs = x[:, :, :, t]                                     # (B, N, F_in)
        out = jnp.zeros((B, N, F_out), jnp.float32)
        for k in range(K):
            t_k_at = cheb_polys[k][None] * spatial_attention   # (B, N, N)
            rhs = jnp.einsum('bji,bjf->bif', t_k_at, gs, precision=hi)
            out = out + jnp.einsum('bif,fo->bio', rhs, theta[k], precision=hi)
        outs.append(out[..., None])
    return jax.nn.relu(jnp.concatenate(outs, axis=-1))


if __name__ == "__main__":
    # Small deterministic setup consistent with the module's shapes.
    B, N, F_in, F_out, T, K = 2, 16, 4, 8, 8, 3

    key = jax.random.PRNGKey(0)
    k_x, k_sat, k_cheb, k_theta = jax.random.split(key, 4)

    x = jax.random.normal(k_x, (B, N, F_in, T), dtype=jnp.float32)
    spatial_attention = jax.nn.softmax(
        jax.random.normal(k_sat, (B, N, N), dtype=jnp.float32), axis=-1)
    cheb_polys = jax.random.normal(k_cheb, (K, N, N), dtype=jnp.float32) * 0.1
    theta = jax.random.normal(k_theta, (K, F_in, F_out), dtype=jnp.float32) * 0.1

    ref = _reference(x, spatial_attention, cheb_polys, theta)

    # Exact-f32 path (matches the PyTorch forward numerics; tolerance allows
    # only for MXU accumulation-order / f32-pass differences).
    out = cheb_conv_with_sat(x, spatial_attention, cheb_polys, theta)
    out = jax.block_until_ready(out)
    assert out.shape == (B, N, F_out, T)
    assert jnp.allclose(out, ref, atol=1e-3, rtol=1e-3), \
        "f32 kernel mismatch vs reference"

    # Fast path: bf16 MXU operands with f32 accumulation, plus batch packing.
    out_bf16 = cheb_conv_with_sat(x, spatial_attention, cheb_polys, theta,
                                  use_bf16_matmul=True, batch_block=2)
    out_bf16 = jax.block_until_ready(out_bf16)
    assert out_bf16.shape == (B, N, F_out, T)
    assert jnp.allclose(out_bf16, ref, atol=5e-2, rtol=5e-2), \
        "bf16 kernel sanity check failed"

    print("KERNEL_OK")
</pallas_src>

<mosaic_0001>
module attributes {stable_mosaic.version = 11 : i64} {
  func.func @_cheb_conv_kernel(%arg0: i32, %arg1: memref<1x16x32xf32, #tpu.memory_space<vmem>>, %arg2: memref<1x16x16xf32, #tpu.memory_space<vmem>>, %arg3: memref<3x16x16xf32, #tpu.memory_space<vmem>>, %arg4: memref<3x32x64xf32, #tpu.memory_space<vmem>>, %arg5: memref<1x16x64xf32, #tpu.memory_space<vmem>>) attributes {dimension_semantics = [#tpu.dimension_semantics<parallel>], iteration_bounds = array<i64: 2>, scalar_prefetch = 0 : i64, scratch_operands = 0 : i64, tpu.core_type = #tpu.core_type<tc>, window_params = [{transform_indices = @transform_0, window_bounds = array<i64: 1, 16, 32>}, {transform_indices = @transform_1, window_bounds = array<i64: 1, 16, 16>}, {pipeline_mode = #tpu.pipeline_mode<synchronous>, transform_indices = @transform_2, window_bounds = array<i64: 3, 16, 16>}, {pipeline_mode = #tpu.pipeline_mode<synchronous>, transform_indices = @transform_3, window_bounds = array<i64: 3, 32, 64>}, {transform_indices = @transform_4, window_bounds = array<i64: 1, 16, 64>}]} {
    %c0 = arith.constant 0 : index
    %c0_0 = arith.constant 0 : index
    %c0_1 = arith.constant 0 : index
    %0 = vector.load %arg3[%c0, %c0_0, %c0_1] : memref<3x16x16xf32, #tpu.memory_space<vmem>>, vector<3x16x16xf32>
    %c0_2 = arith.constant 0 : index
    %c0_3 = arith.constant 0 : index
    %c0_4 = arith.constant 0 : index
    %1 = vector.load %arg4[%c0_2, %c0_3, %c0_4] : memref<3x32x64xf32, #tpu.memory_space<vmem>>, vector<3x32x64xf32>
    %c0_5 = arith.constant 0 : index
    %c0_6 = arith.constant 0 : index
    %c0_7 = arith.constant 0 : index
    %2 = vector.load %arg1[%c0_5, %c0_6, %c0_7] : memref<1x16x32xf32, #tpu.memory_space<vmem>>, vector<1x16x32xf32>
    %3 = vector.shape_cast %2 : vector<1x16x32xf32> to vector<16x32xf32>
    %c0_8 = arith.constant 0 : index
    %c0_9 = arith.constant 0 : index
    %c0_10 = arith.constant 0 : index
    %4 = vector.load %arg2[%c0_8, %c0_9, %c0_10] : memref<1x16x16xf32, #tpu.memory_space<vmem>>, vector<1x16x16xf32>
    %5 = vector.shape_cast %4 : vector<1x16x16xf32> to vector<16x16xf32>
    %cst = arith.constant 0.000000e+00 : f32
    %6 = vector.broadcast %cst : f32 to vector<16x64xf32>
    %7 = vector.extract_strided_slice %0 {offsets = [0, 0, 0], sizes = [1, 16, 16], strides = [1, 1, 1]} : vector<3x16x16xf32> to vector<1x16x16xf32>
    %8 = vector.shape_cast %7 : vector<1x16x16xf32> to vector<16x16xf32>
    %9 = arith.mulf %8, %5 : vector<16x16xf32>
    %cst_11 = arith.constant dense<0.000000e+00> : vector<16x32xf32>
    %10 = tpu.matmul %9, %3, %cst_11 {dimension_numbers = #tpu.dot_dimension_numbers<[1], [0], [0], [1], [0, 0, 1, 1], [], []>} : vector<16x16xf32>, vector<16x32xf32>, vector<16x32xf32> -> vector<16x32xf32>
    %11 = vector.extract_strided_slice %1 {offsets = [0, 0, 0], sizes = [1, 32, 64], strides = [1, 1, 1]} : vector<3x32x64xf32> to vector<1x32x64xf32>
    %12 = vector.shape_cast %11 : vector<1x32x64xf32> to vector<32x64xf32>
    %cst_12 = arith.constant dense<0.000000e+00> : vector<16x64xf32>
    %13 = tpu.matmul %10, %12, %cst_12 {dimension_numbers = #tpu.dot_dimension_numbers<[1], [0], [0], [1], [0, 0, 1, 1], [], []>} : vector<16x32xf32>, vector<32x64xf32>, vector<16x64xf32> -> vector<16x64xf32>
    %14 = arith.addf %6, %13 : vector<16x64xf32>
    %15 = vector.extract_strided_slice %0 {offsets = [1, 0, 0], sizes = [1, 16, 16], strides = [1, 1, 1]} : vector<3x16x16xf32> to vector<1x16x16xf32>
    %16 = vector.shape_cast %15 : vector<1x16x16xf32> to vector<16x16xf32>
    %17 = arith.mulf %16, %5 : vector<16x16xf32>
    %cst_13 = arith.constant dense<0.000000e+00> : vector<16x32xf32>
    %18 = tpu.matmul %17, %3, %cst_13 {dimension_numbers = #tpu.dot_dimension_numbers<[1], [0], [0], [1], [0, 0, 1, 1], [], []>} : vector<16x16xf32>, vector<16x32xf32>, vector<16x32xf32> -> vector<16x32xf32>
    %19 = vector.extract_strided_slice %1 {offsets = [1, 0, 0], sizes = [1, 32, 64], strides = [1, 1, 1]} : vector<3x32x64xf32> to vector<1x32x64xf32>
    %20 = vector.shape_cast %19 : vector<1x32x64xf32> to vector<32x64xf32>
    %cst_14 = arith.constant dense<0.000000e+00> : vector<16x64xf32>
    %21 = tpu.matmul %18, %20, %cst_14 {dimension_numbers = #tpu.dot_dimension_numbers<[1], [0], [0], [1], [0, 0, 1, 1], [], []>} : vector<16x32xf32>, vector<32x64xf32>, vector<16x64xf32> -> vector<16x64xf32>
    %22 = arith.addf %14, %21 : vector<16x64xf32>
    %23 = vector.extract_strided_slice %0 {offsets = [2, 0, 0], sizes = [1, 16, 16], strides = [1, 1, 1]} : vector<3x16x16xf32> to vector<1x16x16xf32>
    %24 = vector.shape_cast %23 : vector<1x16x16xf32> to vector<16x16xf32>
    %25 = arith.mulf %24, %5 : vector<16x16xf32>
    %cst_15 = arith.constant dense<0.000000e+00> : vector<16x32xf32>
    %26 = tpu.matmul %25, %3, %cst_15 {dimension_numbers = #tpu.dot_dimension_numbers<[1], [0], [0], [1], [0, 0, 1, 1], [], []>} : vector<16x16xf32>, vector<16x32xf32>, vector<16x32xf32> -> vector<16x32xf32>
    %27 = vector.extract_strided_slice %1 {offsets = [2, 0, 0], sizes = [1, 32, 64], strides = [1, 1, 1]} : vector<3x32x64xf32> to vector<1x32x64xf32>
    %28 = vector.shape_cast %27 : vector<1x32x64xf32> to vector<32x64xf32>
    %cst_16 = arith.constant dense<0.000000e+00> : vector<16x64xf32>
    %29 = tpu.matmul %26, %28, %cst_16 {dimension_numbers = #tpu.dot_dimension_numbers<[1], [0], [0], [1], [0, 0, 1, 1], [], []>} : vector<16x32xf32>, vector<32x64xf32>, vector<16x64xf32> -> vector<16x64xf32>
    %30 = arith.addf %22, %29 : vector<16x64xf32>
    %cst_17 = arith.constant 0.000000e+00 : f32
    %31 = vector.broadcast %cst_17 : f32 to vector<16x64xf32>
    %32 = arith.maximumf %30, %31 : vector<16x64xf32>
    %c0_18 = arith.constant 0 : index
    %c0_19 = arith.constant 0 : index
    %c0_20 = arith.constant 0 : index
    %33 = vector.load %arg5[%c0_18, %c0_19, %c0_20] : memref<1x16x64xf32, #tpu.memory_space<vmem>>, vector<1x16x64xf32>
    %34 = vector.shape_cast %33 : vector<1x16x64xf32> to vector<16x64xf32>
    %35 = vector.shape_cast %32 : vector<16x64xf32> to vector<1x16x64xf32>
    tpu.vector_store %arg5[%c0_18, %c0_19, %c0_20], %35 {strides = array<i32>} : memref<1x16x64xf32, #tpu.memory_space<vmem>>, vector<1x16x64xf32>,
    return
  }
  func.func @transform_0(%arg0: i32) -> (i32, i32, i32) {
    %c0_i32 = arith.constant 0 : i32
    %c0_i32_0 = arith.constant 0 : i32
    %c0_i32_1 = arith.constant 0 : i32
    return %arg0, %c0_i32, %c0_i32_0 : i32, i32, i32
  }
  func.func @transform_1(%arg0: i32) -> (i32, i32, i32) {
    %c0_i32 = arith.constant 0 : i32
    %c0_i32_0 = arith.constant 0 : i32
    %c0_i32_1 = arith.constant 0 : i32
    return %arg0, %c0_i32, %c0_i32_0 : i32, i32, i32
  }
  func.func @transform_2(%arg0: i32) -> (i32, i32, i32) {
    %c0_i32 = arith.constant 0 : i32
    %c0_i32_0 = arith.constant 0 : i32
    %c0_i32_1 = arith.constant 0 : i32
    %c0_i32_2 = arith.constant 0 : i32
    return %c0_i32, %c0_i32_0, %c0_i32_1 : i32, i32, i32
  }
  func.func @transform_3(%arg0: i32) -> (i32, i32, i32) {
    %c0_i32 = arith.constant 0 : i32
    %c0_i32_0 = arith.constant 0 : i32
    %c0_i32_1 = arith.constant 0 : i32
    %c0_i32_2 = arith.constant 0 : i32
    return %c0_i32, %c0_i32_0, %c0_i32_1 : i32, i32, i32
  }
  func.func @transform_4(%arg0: i32) -> (i32, i32, i32) {
    %c0_i32 = arith.constant 0 : i32
    %c0_i32_0 = arith.constant 0 : i32
    %c0_i32_1 = arith.constant 0 : i32
    return %arg0, %c0_i32, %c0_i32_0 : i32, i32, i32
  }
}

</mosaic_0001>

<llo_original>
// kernel: tpu_custom_call.1
$region0: #{tpu_custom_call.1}
  #allocation0 [shape = 'u32[]', space=smem, size = 0x4, offset = 0x4, fixed_abs, tag = 'smem constant byte address 0x4 - core index']
  #allocation1 [shape = 'u32[144,128]{1,0:T(1,128)}', space=vmem, size = 0x12000, scoped, tag = 'internal scratch']
  %s0 = inlined_call_operand.hbm [shape: f32[2,16,32], index: 0, kind: input, shape index: {}]
  %s1 = inlined_call_operand.hbm [shape: f32[2,16,16], index: 1, kind: input, shape index: {}]
  %s2 = inlined_call_operand.hbm [shape: f32[3,16,16], index: 2, kind: input, shape index: {}]
  %s3 = inlined_call_operand.hbm [shape: f32[3,32,64], index: 3, kind: input, shape index: {}]
  %s4 = inlined_call_operand.hbm [shape: f32[2,16,64], index: 4, kind: output, shape index: {}]
  %s5 = sld [smem:[#allocation0]]
  $region65: #{tpu_custom_call.1} parent=0
    _
  %s7 = ssub.s32 1, %s5
  %s8 = scalar_select 0, %s7, %s5
  $region1: #{tpu_custom_call.1} parent=0
    #allocation2 [shape = 'u8[16384]{0}', space=vmem, size = 0x4000, scoped, tag = 'input window, operand 0']
    #allocation3 [shape = 's32[2]{0}', space=sflag, size = 0x8, scoped, tag = 'scoped memory for tpu_custom_call.1']
    #allocation4 [shape = 's32[2]{0}', space=sflag, size = 0x8, scoped, tag = 'scoped memory for tpu_custom_call.1']
    #allocation5 [shape = 'u8[16384]{0}', space=vmem, size = 0x4000, scoped, tag = 'input window, operand 1']
    #allocation6 [shape = 's32[2]{0}', space=sflag, size = 0x8, scoped, tag = 'scoped memory for tpu_custom_call.1']
    #allocation7 [shape = 'u8[24576]{0}', space=vmem, size = 0x6000, scoped, tag = 'input window, operand 2, single buffered']
    #allocation8 [shape = 'u8[49152]{0}', space=vmem, size = 0xc000, scoped, tag = 'input window, operand 3, single buffered']
    #allocation9 [shape = 's32[1]{0}', space=sflag, size = 0x4, scoped, tag = 'scoped memory for tpu_custom_call.1']
    #allocation10 [shape = 'u8[16384]{0}', space=vmem, size = 0x4000, scoped, tag = 'output window, operand 0']
    %9 = vsyncpa [#allocation3], 0
    %s10 = scalar_lea.sflag [#allocation3], 1
    %11 = vsyncpa %s10, 0
    %12 = vsyncpa [#allocation6], 0
    %s13 = scalar_lea.sflag [#allocation6], 1
    %14 = vsyncpa %s13, 0
    %15 = vsyncpa [#allocation9], 0
    %16 = vsyncpa [#allocation4], 0
    %s17 = scalar_lea.sflag [#allocation4], 1
    %18 = vsyncpa %s17, 0
    loop: start=0, step=1, limit=4
    $region2: #{tpu_custom_call.1} parent=1 // loop_pre_header
      _
    $region3: #{tpu_custom_call.1} parent=1 // loop_header
      %s20 = sphi 0, %s24
      %p21 = scmp.ge.s32.totalorder %s20, 4
      %s30 = sphi 0, %s32
      %s33 = sphi 0, %s30
      %s34 = sphi 0, %s33
      %s50 = sphi 0, %s34
      %s56 = sphi 0, %s58
      %s59 = sphi 0, %s56
      %s60 = sphi 0, %s59
      %s76 = sphi 0, %s60
      %s80 = sphi 0, %s80
      %s82 = sphi 0, %s80
      %s83 = sphi 0, %s82
      %s97 = sphi 0, %s83
      %s101 = sphi 0, %s101
      %s103 = sphi 0, %s101
      %s104 = sphi 0, %s103
      %s118 = sphi 0, %s104
      %s124 = sphi 0, %s126
      %s127 = sphi 0, %s124
      %s128 = sphi 0, %s127
      %s144 = sphi 0, %s128
    $region4: #{tpu_custom_call.1} parent=1 // loop_header_branch
      %23 = sbr.rel (%p21) target = $region8
    $region5: #{tpu_custom_call.1} parent=1 // loop_body
      %s25 = ssub.s32 %s20, 1
      %s26 = ssub.s32 %s20, 2
      %s27 = sadd.s32 %s20, 1
      %s28 = ssub.s32 %s20, %s27
      %p29 = scmp.eq.s32.totalorder %s28, 0
      %s31 = sadd.s32 %s30, 1
      %s32 = scalar_select %p29, %s30, %s31
      %p35 = pneg %p29
      %p36 = scmp.eq.s32.totalorder %s20, 1
      %p37 = por %p35, %p36
      %p38 = scmp.ne.s32.totalorder %s30, %s33
      %p39 = scmp.eq.s32.totalorder %s20, 0
      %p40 = por %p38, %p39
      %p41 = scmp.ne.s32.totalorder %s30, %s33
      %p42 = scmp.eq.s32.totalorder %s25, 1
      %p43 = por %p41, %p42
      %p44 = scmp.ne.s32.totalorder %s33, %s34
      %p45 = scmp.eq.s32.totalorder %s25, 0
      %p46 = por %p44, %p45
      %p47 = scmp.ne.s32.totalorder %s33, %s34
      %p48 = scmp.eq.s32.totalorder %s26, 1
      %p49 = por %p47, %p48
      %p51 = scmp.ne.s32.totalorder %s34, %s50
      %p52 = scmp.eq.s32.totalorder %s26, 0
      %p53 = por %p51, %p52
      %s54 = ssub.s32 %s20, %s27
      %p55 = scmp.eq.s32.totalorder %s54, 0
      %s57 = sadd.s32 %s56, 1
      %s58 = scalar_select %p55, %s56, %s57
      %p61 = pneg %p55
      %p62 = scmp.eq.s32.totalorder %s20, 1
      %p63 = por %p61, %p62
      %p64 = scmp.ne.s32.totalorder %s56, %s59
      %p65 = scmp.eq.s32.totalorder %s20, 0
      %p66 = por %p64, %p65
      %p67 = scmp.ne.s32.totalorder %s56, %s59
      %p68 = scmp.eq.s32.totalorder %s25, 1
      %p69 = por %p67, %p68
      %p70 = scmp.ne.s32.totalorder %s59, %s60
      %p71 = scmp.eq.s32.totalorder %s25, 0
      %p72 = por %p70, %p71
      %p73 = scmp.ne.s32.totalorder %s59, %s60
      %p74 = scmp.eq.s32.totalorder %s26, 1
      %p75 = por %p73, %p74
      %p77 = scmp.ne.s32.totalorder %s60, %s76
      %p78 = scmp.eq.s32.totalorder %s26, 0
      %p79 = por %p77, %p78
      %s81 = sadd.s32 %s80, 1
      %p84 = scmp.eq.s32.totalorder %s20, 1
      %p85 = scmp.ne.s32.totalorder %s80, %s82
      %p86 = scmp.eq.s32.totalorder %s20, 0
      %p87 = por %p85, %p86
      %p88 = scmp.ne.s32.totalorder %s80, %s82
      %p89 = scmp.eq.s32.totalorder %s25, 1
      %p90 = por %p88, %p89
      %p91 = scmp.ne.s32.totalorder %s82, %s83
      %p92 = scmp.eq.s32.totalorder %s25, 0
      %p93 = por %p91, %p92
      %p94 = scmp.ne.s32.totalorder %s82, %s83
      %p95 = scmp.eq.s32.totalorder %s26, 1
      %p96 = por %p94, %p95
      %p98 = scmp.ne.s32.totalorder %s83, %s97
      %p99 = scmp.eq.s32.totalorder %s26, 0
      %p100 = por %p98, %p99
      %s102 = sadd.s32 %s101, 1
      %p105 = scmp.eq.s32.totalorder %s20, 1
      %p106 = scmp.ne.s32.totalorder %s101, %s103
      %p107 = scmp.eq.s32.totalorder %s20, 0
      %p108 = por %p106, %p107
      %p109 = scmp.ne.s32.totalorder %s101, %s103
      %p110 = scmp.eq.s32.totalorder %s25, 1
      %p111 = por %p109, %p110
      %p112 = scmp.ne.s32.totalorder %s103, %s104
      %p113 = scmp.eq.s32.totalorder %s25, 0
      %p114 = por %p112, %p113
      %p115 = scmp.ne.s32.totalorder %s103, %s104
      %p116 = scmp.eq.s32.totalorder %s26, 1
      %p117 = por %p115, %p116
      %p119 = scmp.ne.s32.totalorder %s104, %s118
      %p120 = scmp.eq.s32.totalorder %s26, 0
      %p121 = por %p119, %p120
      %s122 = ssub.s32 %s20, %s27
      %p123 = scmp.eq.s32.totalorder %s122, 0
      %s125 = sadd.s32 %s124, 1
      %s126 = scalar_select %p123, %s124, %s125
      %p129 = pneg %p123
      %p130 = scmp.eq.s32.totalorder %s20, 1
      %p131 = por %p129, %p130
      %p132 = scmp.ne.s32.totalorder %s124, %s127
      %p133 = scmp.eq.s32.totalorder %s20, 0
      %p134 = por %p132, %p133
      %p135 = scmp.ne.s32.totalorder %s124, %s127
      %p136 = scmp.eq.s32.totalorder %s25, 1
      %p137 = por %p135, %p136
      %p138 = scmp.ne.s32.totalorder %s127, %s128
      %p139 = scmp.eq.s32.totalorder %s25, 0
      %p140 = por %p138, %p139
      %p141 = scmp.ne.s32.totalorder %s127, %s128
      %p142 = scmp.eq.s32.totalorder %s26, 1
      %p143 = por %p141, %p142
      %p145 = scmp.ne.s32.totalorder %s128, %s144
      %p146 = scmp.eq.s32.totalorder %s26, 0
      %p147 = por %p145, %p146
      %p148 = scmp.le.s32.totalorder 1, %s20
      %p149 = scmp.lt.s32.totalorder %s20, 3
      %p150 = pnand %p148, %p149
      %p151 = pneg %p150
      // Predicated region
      $region9: #{tpu_custom_call.1} parent=5 // pred_check
        _
      $region10: #{tpu_custom_call.1} parent=5 // pred_check_branch
        %153 = sbr.rel (%p150) target = $region12
      $region11: #{tpu_custom_call.1} parent=5 // pred_region
        %s154 = ssub.s32 %s20, 1
        // Predicated region
        $region13: #{tpu_custom_call.1} parent=11 // pred_check
          %p155 = pneg %p93
        $region14: #{tpu_custom_call.1} parent=11 // pred_check_branch
          %157 = sbr.rel (%p155) target = $region16
        $region15: #{tpu_custom_call.1} parent=11 // pred_region
          %s159 = ssub.s32 768, 768
          %160 = vsyncadd [#allocation6], %s159
          %s161 = sshll.u32 [#allocation7], 4
          %s162 = int_to_ptr.vmem [resolvable:$true] %s161
          %167 = dma.hbm_to_vmem [thread:$0]  %s2, 768, %s162, [#allocation6], 128, 128, 8
        $region16: #{tpu_custom_call.1} parent=11 // pred_fallthru
          _
        // Predicated region
        $region17: #{tpu_custom_call.1} parent=11 // pred_check
          %p168 = pneg %p114
        $region18: #{tpu_custom_call.1} parent=11 // pred_check_branch
          %170 = sbr.rel (%p168) target = $region20
        $region19: #{tpu_custom_call.1} parent=11 // pred_region
          %s172 = ssub.s32 1536, 1536
          %173 = vsyncadd [#allocation9], %s172
          %s174 = sshll.u32 [#allocation8], 4
          %s175 = int_to_ptr.vmem [resolvable:$true] %s174
          %180 = dma.hbm_to_vmem [thread:$0]  %s3, 1536, %s175, [#allocation9], 128, 128, 8
        $region20: #{tpu_custom_call.1} parent=11 // pred_fallthru
          _
      $region12: #{tpu_custom_call.1} parent=5 // pred_fallthru
        _
      %p181 = scmp.lt.s32.totalorder %s20, 2
      // Predicated region
      $region21: #{tpu_custom_call.1} parent=5 // pred_check
        %p182 = pneg %p181
      $region22: #{tpu_custom_call.1} parent=5 // pred_check_branch
        %184 = sbr.rel (%p182) target = $region24
      $region23: #{tpu_custom_call.1} parent=5 // pred_region
        // Predicated region
        $region25: #{tpu_custom_call.1} parent=23 // pred_check
          %p185 = pneg %p40
        $region26: #{tpu_custom_call.1} parent=23 // pred_check_branch
          %187 = sbr.rel (%p185) target = $region28
        $region27: #{tpu_custom_call.1} parent=23 // pred_region
          %s188 = sand.u32 %s30, 1
          %s189 = scalar_lea.sflag [#allocation3], %s188
          %s190 = sand.u32 %s30, 1
          %s191 = smul.addr %s190, 16
          %s192 = scalar_lea.vmem [#allocation2], %s191
          %s194 = ssub.s32 256, 256
          %195 = vsyncadd %s189, %s194
          %s196 = smul.addr %s20, 2
          %s197 = smul.addr %s196, 128
          %s198 = scalar_lea.hbm %s0, %s197
          %s199 = sshll.u32 %s192, 4
          %s200 = int_to_ptr.vmem [resolvable:$true] %s199
          %205 = dma.hbm_to_vmem [thread:$0]  %s198, 256, %s200, %s189, 128, 128, 8
        $region28: #{tpu_custom_call.1} parent=23 // pred_fallthru
          _
        // Predicated region
        $region29: #{tpu_custom_call.1} parent=23 // pred_check
          %p206 = pneg %p66
        $region30: #{tpu_custom_call.1} parent=23 // pred_check_branch
          %208 = sbr.rel (%p206) target = $region32
        $region31: #{tpu_custom_call.1} parent=23 // pred_region
          %s209 = sand.u32 %s20, 1
          %s210 = scalar_lea.sflag [#allocation6], %s209
          %s211 = sand.u32 %s56, 1
          %s212 = smul.addr %s211, 16
          %s213 = scalar_lea.vmem [#allocation5], %s212
          %s215 = ssub.s32 256, 256
          %216 = vsyncadd %s210, %s215
          %s217 = smul.addr %s20, 2
          %s218 = smul.addr %s217, 128
          %s219 = scalar_lea.hbm %s1, %s218
          %s220 = sshll.u32 %s213, 4
          %s221 = int_to_ptr.vmem [resolvable:$true] %s220
          %226 = dma.hbm_to_vmem [thread:$0]  %s219, 256, %s221, %s210, 128, 128, 8
        $region32: #{tpu_custom_call.1} parent=23 // pred_fallthru
          _
      $region24: #{tpu_custom_call.1} parent=5 // pred_fallthru
        _
      %p227 = scmp.le.s32.totalorder 1, %s20
      %p228 = scmp.lt.s32.totalorder %s20, 3
      %p229 = pnand %p227, %p228
      %p230 = pneg %p229
      // Predicated region
      $region33: #{tpu_custom_call.1} parent=5 // pred_check
        _
      $region34: #{tpu_custom_call.1} parent=5 // pred_check_branch
        %232 = sbr.rel (%p229) target = $region36
      $region35: #{tpu_custom_call.1} parent=5 // pred_region
        %s233 = ssub.s32 %s20, 1
        %s234 = sand.u32 %s33, 1
        %s235 = scalar_lea.sflag [#allocation3], %s234
        %s236 = sand.u32 %s33, 1
        %s237 = smul.addr %s236, 16
        %s238 = scalar_lea.vmem [#allocation2], %s237
        // Predicated region
        $region37: #{tpu_custom_call.1} parent=35 // pred_check
          %p239 = pneg %p46
        $region38: #{tpu_custom_call.1} parent=35 // pred_check_branch
          %241 = sbr.rel (%p239) target = $region40
        $region39: #{tpu_custom_call.1} parent=35 // pred_region
          %242 = dma.done %s235, 256
        $region40: #{tpu_custom_call.1} parent=35 // pred_fallthru
          _
        %s243 = sand.u32 %s25, 1
        %s244 = scalar_lea.sflag [#allocation6], %s243
        %s245 = sand.u32 %s59, 1
        %s246 = smul.addr %s245, 16
        %s247 = scalar_lea.vmem [#allocation5], %s246
        // Predicated region
        $region41: #{tpu_custom_call.1} parent=35 // pred_check
          %p248 = pneg %p72
        $region42: #{tpu_custom_call.1} parent=35 // pred_check_branch
          %250 = sbr.rel (%p248) target = $region44
        $region43: #{tpu_custom_call.1} parent=35 // pred_region
          %251 = dma.done %s244, 256
        $region44: #{tpu_custom_call.1} parent=35 // pred_fallthru
          _
        // Predicated region
        $region45: #{tpu_custom_call.1} parent=35 // pred_check
          %p252 = pneg %p93
        $region46: #{tpu_custom_call.1} parent=35 // pred_check_branch
          %254 = sbr.rel (%p252) target = $region48
        $region47: #{tpu_custom_call.1} parent=35 // pred_region
          %255 = dma.done [#allocation6], 768
        $region48: #{tpu_custom_call.1} parent=35 // pred_fallthru
          _
        // Predicated region
        $region49: #{tpu_custom_call.1} parent=35 // pred_check
          %p256 = pneg %p114
        $region50: #{tpu_custom_call.1} parent=35 // pred_check_branch
          %258 = sbr.rel (%p256) target = $region52
        $region51: #{tpu_custom_call.1} parent=35 // pred_region
          %259 = dma.done [#allocation9], 1536
        $region52: #{tpu_custom_call.1} parent=35 // pred_fallthru
          _
        %s260 = sand.u32 %s33, 1
        %s261 = scalar_lea.sflag [#allocation3], %s260
        %s262 = sand.u32 %s33, 1
        %s263 = smul.addr %s262, 16
        %s264 = scalar_lea.vmem [#allocation2], %s263
        %p265 = pneg %p46
        %p266 = pneg %p43
        %s267 = sand.u32 %s25, 1
        %s268 = scalar_lea.sflag [#allocation6], %s267
        %s269 = sand.u32 %s59, 1
        %s270 = smul.addr %s269, 16
        %s271 = scalar_lea.vmem [#allocation5], %s270
        %p272 = pneg %p72
        %p273 = pneg %p69
        %p274 = pneg %p93
        %p275 = pneg %p90
        %p276 = pneg %p114
        %p277 = pneg %p111
        %p278 = pneg %p140
        %p279 = pneg %p137
        %s280 = sand.u32 %s127, 1
        %s281 = scalar_lea.sflag [#allocation4], %s280
        %s282 = sand.u32 %s127, 1
        %s283 = smul.addr %s282, 16
        %s284 = scalar_lea.vmem [#allocation10], %s283
        %v285 = vld [vmem:[#allocation7] sm:$0xff]
        %v286 = vld [vmem:[#allocation7 + $0x8] sm:$0xff]
        %v287 = vld [vmem:[#allocation7 + $0x10] sm:$0xff]
        %v288 = vld [vmem:[#allocation7 + $0x18] sm:$0xff]
        %v289 = vld [vmem:[#allocation7 + $0x20] sm:$0xff]
        %v290 = vld [vmem:[#allocation7 + $0x28] sm:$0xff]
        %v291 = vld [vmem:[#allocation8] sm:$0xff]
        %v292 = vld [vmem:[#allocation8 + $0x8] sm:$0xff]
        %v293 = vld [vmem:[#allocation8 + $0x10] sm:$0xff]
        %v294 = vld [vmem:[#allocation8 + $0x18] sm:$0xff]
        %v295 = vld [vmem:[#allocation8 + $0x20] sm:$0xff]
        %v296 = vld [vmem:[#allocation8 + $0x28] sm:$0xff]
        %v297 = vld [vmem:[#allocation8 + $0x30] sm:$0xff]
        %v298 = vld [vmem:[#allocation8 + $0x38] sm:$0xff]
        %v299 = vld [vmem:[#allocation8 + $0x40] sm:$0xff]
        %v300 = vld [vmem:[#allocation8 + $0x48] sm:$0xff]
        %v301 = vld [vmem:[#allocation8 + $0x50] sm:$0xff]
        %v302 = vld [vmem:[#allocation8 + $0x58] sm:$0xff]
        %v303 = vld [vmem:[%s238] sm:$0xff]
        %v304 = vld [vmem:[%s238 + $0x8] sm:$0xff]
        %v305 = vld [vmem:[%s247] sm:$0xff]
        %v306 = vld [vmem:[%s247 + $0x8] sm:$0xff]
        %v307 = vmul.f32 %v285, %v305
        %v308 = vmul.f32 %v286, %v306
        %vm309 = vcmask 130048
        %v311 = vsel %vm309, %v307, 0
        %v314 = vsel %vm309, %v308, 0
        %316 = vmatprep.subr.mxu0 0.0
        %317 = vmatpush1.msra.mxu0 %v303
        %318 = vmatprep.subr.mxu0 0.0
        %319 = vmatpush1.msra.mxu0 %v304
        %320 = vmatprep.subr.mxu0 0.0
        %321 = vmatpush1.msra.mxu0 0.0
        %322 = vmatprep.subr.mxu0 0.0
        %323 = vmatpush1.msra.mxu0 0.0
        %324 = vmatprep.subr.mxu0 0.0
        %325 = vmatpush1.msra.mxu0 0.0
        %326 = vmatprep.subr.mxu0 0.0
        %327 = vmatpush1.msra.mxu0 0.0
        %328 = vmatprep.subr.mxu0 0.0
        %329 = vmatpush1.msra.mxu0 0.0
        %330 = vmatprep.subr.mxu0 0.0
        %331 = vmatpush1.msra.mxu0 0.0
        %332 = vmatprep.subr.mxu0 0.0
        %333 = vmatpush1.msra.mxu0 0.0
        %334 = vmatprep.subr.mxu0 0.0
        %335 = vmatpush1.msra.mxu0 0.0
        %336 = vmatprep.subr.mxu0 0.0
        %337 = vmatpush1.msra.mxu0 0.0
        %338 = vmatprep.subr.mxu0 0.0
        %339 = vmatpush1.msra.mxu0 0.0
        %340 = vmatprep.subr.mxu0 0.0
        %341 = vmatpush1.msra.mxu0 0.0
        %342 = vmatprep.subr.mxu0 0.0
        %343 = vmatpush1.msra.mxu0 0.0
        %344 = vmatprep.subr.mxu0 0.0
        %345 = vmatpush1.msra.mxu0 0.0
        %346 = vmatprep.subr.mxu0 0.0
        %347 = vmatpush1.msra.mxu0 0.0
        %348 = vmatprep.subr.mxu0 0.0
        %349 = vmatpush1.msra.mxu0 0.0
        %350 = vmatprep.subr.mxu0 0.0
        %351 = vmatpush1.msra.mxu0 0.0
        %352 = vmatprep.subr.mxu0 0.0
        %353 = vmatpush1.msra.mxu0 0.0
        %354 = vmatprep.subr.mxu0 0.0
        %355 = vmatpush1.msra.mxu0 0.0
        %356 = vmatprep.subr.mxu0 0.0
        %357 = vmatpush1.msra.mxu0 0.0
        %358 = vmatprep.subr.mxu0 0.0
        %359 = vmatpush1.msra.mxu0 0.0
        %360 = vmatprep.subr.mxu0 0.0
        %361 = vmatpush1.msra.mxu0 0.0
        %362 = vmatprep.subr.mxu0 0.0
        %363 = vmatpush1.msra.mxu0 0.0
        %364 = vmatprep.subr.mxu0 0.0
        %365 = vmatpush1.msra.mxu0 0.0
        %366 = vmatprep.subr.mxu0 0.0
        %367 = vmatpush1.msra.mxu0 0.0
        %368 = vmatprep.subr.mxu0 0.0
        %369 = vmatpush1.msra.mxu0 0.0
        %370 = vmatprep.subr.mxu0 0.0
        %371 = vmatpush1.msra.mxu0 0.0
        %372 = vmatprep.subr.mxu0 0.0
        %373 = vmatpush1.msra.mxu0 0.0
        %374 = vmatprep.subr.mxu0 0.0
        %375 = vmatpush1.msra.mxu0 0.0
        %376 = vmatprep.subr.mxu0 0.0
        %377 = vmatpush1.msra.mxu0 0.0
        %378 = vmatprep.subr.mxu0 0.0
        %379 = vmatpush1.msra.mxu0 0.0
        %380 = vmatprep.mubr.f32.mxu0 0.0
        %381 = vmatmul.mubr.f32.gmra.mrb[0].mxu0 %v311
        %v382 = vpop.f32.mrb[0].mxu0
        %v383 = vadd.f32 0.0, %v382
        %v384 = vpop.f32.mrb[0].mxu0
        %385 = vmatprep.mubr.f32.mxu0 0.0
        %386 = vmatmul.mubr.f32.gmra.mrb[0].mxu0 %v314
        %v387 = vpop.f32.mrb[0].mxu0
        %v388 = vadd.f32 0.0, %v387
        %v389 = vpop.f32.mrb[0].mxu0
        %390 = vdwg.mxu0
        %v391 = vmul.f32 %v287, %v305
        %v392 = vmul.f32 %v288, %v306
        %v394 = vsel %vm309, %v391, 0
        %v397 = vsel %vm309, %v392, 0
        %399 = vmatprep.subr.mxu0 0.0
        %400 = vmatpush1.msra.mxu0 %v303
        %401 = vmatprep.subr.mxu0 0.0
        %402 = vmatpush1.msra.mxu0 %v304
        %403 = vmatprep.subr.mxu0 0.0
        %404 = vmatpush1.msra.mxu0 0.0
        %405 = vmatprep.subr.mxu0 0.0
        %406 = vmatpush1.msra.mxu0 0.0
        %407 = vmatprep.subr.mxu0 0.0
        %408 = vmatpush1.msra.mxu0 0.0
        %409 = vmatprep.subr.mxu0 0.0
        %410 = vmatpush1.msra.mxu0 0.0
        %411 = vmatprep.subr.mxu0 0.0
        %412 = vmatpush1.msra.mxu0 0.0
        %413 = vmatprep.subr.mxu0 0.0
        %414 = vmatpush1.msra.mxu0 0.0
        %415 = vmatprep.subr.mxu0 0.0
        %416 = vmatpush1.msra.mxu0 0.0
        %417 = vmatprep.subr.mxu0 0.0
        %418 = vmatpush1.msra.mxu0 0.0
        %419 = vmatprep.subr.mxu0 0.0
        %420 = vmatpush1.msra.mxu0 0.0
        %421 = vmatprep.subr.mxu0 0.0
        %422 = vmatpush1.msra.mxu0 0.0
        %423 = vmatprep.subr.mxu0 0.0
        %424 = vmatpush1.msra.mxu0 0.0
        %425 = vmatprep.subr.mxu0 0.0
        %426 = vmatpush1.msra.mxu0 0.0
        %427 = vmatprep.subr.mxu0 0.0
        %428 = vmatpush1.msra.mxu0 0.0
        %429 = vmatprep.subr.mxu0 0.0
        %430 = vmatpush1.msra.mxu0 0.0
        %431 = vmatprep.subr.mxu0 0.0
        %432 = vmatpush1.msra.mxu0 0.0
        %433 = vmatprep.subr.mxu0 0.0
        %434 = vmatpush1.msra.mxu0 0.0
        %435 = vmatprep.subr.mxu0 0.0
        %436 = vmatpush1.msra.mxu0 0.0
        %437 = vmatprep.subr.mxu0 0.0
        %438 = vmatpush1.msra.mxu0 0.0
        %439 = vmatprep.subr.mxu0 0.0
        %440 = vmatpush1.msra.mxu0 0.0
        %441 = vmatprep.subr.mxu0 0.0
        %442 = vmatpush1.msra.mxu0 0.0
        %443 = vmatprep.subr.mxu0 0.0
        %444 = vmatpush1.msra.mxu0 0.0
        %445 = vmatprep.subr.mxu0 0.0
        %446 = vmatpush1.msra.mxu0 0.0
        %447 = vmatprep.subr.mxu0 0.0
        %448 = vmatpush1.msra.mxu0 0.0
        %449 = vmatprep.subr.mxu0 0.0
        %450 = vmatpush1.msra.mxu0 0.0
        %451 = vmatprep.subr.mxu0 0.0
        %452 = vmatpush1.msra.mxu0 0.0
        %453 = vmatprep.subr.mxu0 0.0
        %454 = vmatpush1.msra.mxu0 0.0
        %455 = vmatprep.subr.mxu0 0.0
        %456 = vmatpush1.msra.mxu0 0.0
        %457 = vmatprep.subr.mxu0 0.0
        %458 = vmatpush1.msra.mxu0 0.0
        %459 = vmatprep.subr.mxu0 0.0
        %460 = vmatpush1.msra.mxu0 0.0
        %461 = vmatprep.subr.mxu0 0.0
        %462 = vmatpush1.msra.mxu0 0.0
        %463 = vmatprep.mubr.f32.mxu0 0.0
        %464 = vmatmul.mubr.f32.gmra.mrb[0].mxu0 %v394
        %v465 = vpop.f32.mrb[0].mxu0
        %v466 = vadd.f32 0.0, %v465
        %v467 = vpop.f32.mrb[0].mxu0
        %468 = vmatprep.mubr.f32.mxu0 0.0
        %469 = vmatmul.mubr.f32.gmra.mrb[0].mxu0 %v397
        %v470 = vpop.f32.mrb[0].mxu0
        %v471 = vadd.f32 0.0, %v470
        %v472 = vpop.f32.mrb[0].mxu0
        %473 = vdwg.mxu0
        %vm474 = vcmask 261120
        %v476 = vsel %vm474, %v466, 0
        %v479 = vsel %vm474, %v471, 0
        %481 = vmatprep.subr.mxu0 0.0
        %482 = vmatpush1.msra.mxu0 %v295
        %483 = vmatprep.subr.mxu0 0.0
        %484 = vmatpush1.msra.mxu0 %v296
        %485 = vmatprep.subr.mxu0 0.0
        %486 = vmatpush1.msra.mxu0 %v297
        %487 = vmatprep.subr.mxu0 0.0
        %488 = vmatpush1.msra.mxu0 %v298
        %489 = vmatprep.subr.mxu0 0.0
        %490 = vmatpush1.msra.mxu0 0.0
        %491 = vmatprep.subr.mxu0 0.0
        %492 = vmatpush1.msra.mxu0 0.0
        %493 = vmatprep.subr.mxu0 0.0
        %494 = vmatpush1.msra.mxu0 0.0
        %495 = vmatprep.subr.mxu0 0.0
        %496 = vmatpush1.msra.mxu0 0.0
        %497 = vmatprep.subr.mxu0 0.0
        %498 = vmatpush1.msra.mxu0 0.0
        %499 = vmatprep.subr.mxu0 0.0
        %500 = vmatpush1.msra.mxu0 0.0
        %501 = vmatprep.subr.mxu0 0.0
        %502 = vmatpush1.msra.mxu0 0.0
        %503 = vmatprep.subr.mxu0 0.0
        %504 = vmatpush1.msra.mxu0 0.0
        %505 = vmatprep.subr.mxu0 0.0
        %506 = vmatpush1.msra.mxu0 0.0
        %507 = vmatprep.subr.mxu0 0.0
        %508 = vmatpush1.msra.mxu0 0.0
        %509 = vmatprep.subr.mxu0 0.0
        %510 = vmatpush1.msra.mxu0 0.0
        %511 = vmatprep.subr.mxu0 0.0
        %512 = vmatpush1.msra.mxu0 0.0
        %513 = vmatprep.subr.mxu0 0.0
        %514 = vmatpush1.msra.mxu0 0.0
        %515 = vmatprep.subr.mxu0 0.0
        %516 = vmatpush1.msra.mxu0 0.0
        %517 = vmatprep.subr.mxu0 0.0
        %518 = vmatpush1.msra.mxu0 0.0
        %519 = vmatprep.subr.mxu0 0.0
        %520 = vmatpush1.msra.mxu0 0.0
        %521 = vmatprep.subr.mxu0 0.0
        %522 = vmatpush1.msra.mxu0 0.0
        %523 = vmatprep.subr.mxu0 0.0
        %524 = vmatpush1.msra.mxu0 0.0
        %525 = vmatprep.subr.mxu0 0.0
        %526 = vmatpush1.msra.mxu0 0.0
        %527 = vmatprep.subr.mxu0 0.0
        %528 = vmatpush1.msra.mxu0 0.0
        %529 = vmatprep.subr.mxu0 0.0
        %530 = vmatpush1.msra.mxu0 0.0
        %531 = vmatprep.subr.mxu0 0.0
        %532 = vmatpush1.msra.mxu0 0.0
        %533 = vmatprep.subr.mxu0 0.0
        %534 = vmatpush1.msra.mxu0 0.0
        %535 = vmatprep.subr.mxu0 0.0
        %536 = vmatpush1.msra.mxu0 0.0
        %537 = vmatprep.subr.mxu0 0.0
        %538 = vmatpush1.msra.mxu0 0.0
        %539 = vmatprep.subr.mxu0 0.0
        %540 = vmatpush1.msra.mxu0 0.0
        %541 = vmatprep.subr.mxu0 0.0
        %542 = vmatpush1.msra.mxu0 0.0
        %543 = vmatprep.subr.mxu0 0.0
        %544 = vmatpush1.msra.mxu0 0.0
        %545 = vmatprep.mubr.f32.mxu0 0.0
        %546 = vmatmul.mubr.f32.gmra.mrb[0].mxu0 %v476
        %v547 = vpop.f32.mrb[0].mxu0
        %v548 = vadd.f32 0.0, %v547
        %v549 = vpop.f32.mrb[0].mxu0
        %550 = vmatprep.mubr.f32.mxu0 0.0
        %551 = vmatmul.mubr.f32.gmra.mrb[0].mxu0 %v479
        %v552 = vpop.f32.mrb[0].mxu0
        %v553 = vadd.f32 0.0, %v552
        %v554 = vpop.f32.mrb[0].mxu0
        %555 = vdwg.mxu0
        %v557 = vsel %vm474, %v383, 0
        %v560 = vsel %vm474, %v388, 0
        %562 = vmatprep.subr.mxu0 0.0
        %563 = vmatpush1.msra.mxu0 %v291
        %564 = vmatprep.subr.mxu0 0.0
        %565 = vmatpush1.msra.mxu0 %v292
        %566 = vmatprep.subr.mxu0 0.0
        %567 = vmatpush1.msra.mxu0 %v293
        %568 = vmatprep.subr.mxu0 0.0
        %569 = vmatpush1.msra.mxu0 %v294
        %570 = vmatprep.subr.mxu0 0.0
        %571 = vmatpush1.msra.mxu0 0.0
        %572 = vmatprep.subr.mxu0 0.0
        %573 = vmatpush1.msra.mxu0 0.0
        %574 = vmatprep.subr.mxu0 0.0
        %575 = vmatpush1.msra.mxu0 0.0
        %576 = vmatprep.subr.mxu0 0.0
        %577 = vmatpush1.msra.mxu0 0.0
        %578 = vmatprep.subr.mxu0 0.0
        %579 = vmatpush1.msra.mxu0 0.0
        %580 = vmatprep.subr.mxu0 0.0
        %581 = vmatpush1.msra.mxu0 0.0
        %582 = vmatprep.subr.mxu0 0.0
        %583 = vmatpush1.msra.mxu0 0.0
        %584 = vmatprep.subr.mxu0 0.0
        %585 = vmatpush1.msra.mxu0 0.0
        %586 = vmatprep.subr.mxu0 0.0
        %587 = vmatpush1.msra.mxu0 0.0
        %588 = vmatprep.subr.mxu0 0.0
        %589 = vmatpush1.msra.mxu0 0.0
        %590 = vmatprep.subr.mxu0 0.0
        %591 = vmatpush1.msra.mxu0 0.0
        %592 = vmatprep.subr.mxu0 0.0
        %593 = vmatpush1.msra.mxu0 0.0
        %594 = vmatprep.subr.mxu0 0.0
        %595 = vmatpush1.msra.mxu0 0.0
        %596 = vmatprep.subr.mxu0 0.0
        %597 = vmatpush1.msra.mxu0 0.0
        %598 = vmatprep.subr.mxu0 0.0
        %599 = vmatpush1.msra.mxu0 0.0
        %600 = vmatprep.subr.mxu0 0.0
        %601 = vmatpush1.msra.mxu0 0.0
        %602 = vmatprep.subr.mxu0 0.0
        %603 = vmatpush1.msra.mxu0 0.0
        %604 = vmatprep.subr.mxu0 0.0
        %605 = vmatpush1.msra.mxu0 0.0
        %606 = vmatprep.subr.mxu0 0.0
        %607 = vmatpush1.msra.mxu0 0.0
        %608 = vmatprep.subr.mxu0 0.0
        %609 = vmatpush1.msra.mxu0 0.0
        %610 = vmatprep.subr.mxu0 0.0
        %611 = vmatpush1.msra.mxu0 0.0
        %612 = vmatprep.subr.mxu0 0.0
        %613 = vmatpush1.msra.mxu0 0.0
        %614 = vmatprep.subr.mxu0 0.0
        %615 = vmatpush1.msra.mxu0 0.0
        %616 = vmatprep.subr.mxu0 0.0
        %617 = vmatpush1.msra.mxu0 0.0
        %618 = vmatprep.subr.mxu0 0.0
        %619 = vmatpush1.msra.mxu0 0.0
        %620 = vmatprep.subr.mxu0 0.0
        %621 = vmatpush1.msra.mxu0 0.0
        %622 = vmatprep.subr.mxu0 0.0
        %623 = vmatpush1.msra.mxu0 0.0
        %624 = vmatprep.subr.mxu0 0.0
        %625 = vmatpush1.msra.mxu0 0.0
        %626 = vmatprep.mubr.f32.mxu0 0.0
        %627 = vmatmul.mubr.f32.gmra.mrb[0].mxu0 %v557
        %v628 = vpop.f32.mrb[0].mxu0
        %v629 = vadd.f32 %v548, %v628
        %v630 = vpop.f32.mrb[0].mxu0
        %631 = vmatprep.mubr.f32.mxu0 0.0
        %632 = vmatmul.mubr.f32.gmra.mrb[0].mxu0 %v560
        %v633 = vpop.f32.mrb[0].mxu0
        %v634 = vadd.f32 %v553, %v633
        %v635 = vpop.f32.mrb[0].mxu0
        %636 = vdwg.mxu0
        %v637 = vmul.f32 %v289, %v305
        %v638 = vmul.f32 %v290, %v306
        %v640 = vsel %vm309, %v637, 0
        %v643 = vsel %vm309, %v638, 0
        %645 = vmatprep.subr.mxu0 0.0
        %646 = vmatpush1.msra.mxu0 %v303
        %647 = vmatprep.subr.mxu0 0.0
        %648 = vmatpush1.msra.mxu0 %v304
        %649 = vmatprep.subr.mxu0 0.0
        %650 = vmatpush1.msra.mxu0 0.0
        %651 = vmatprep.subr.mxu0 0.0
        %652 = vmatpush1.msra.mxu0 0.0
        %653 = vmatprep.subr.mxu0 0.0
        %654 = vmatpush1.msra.mxu0 0.0
        %655 = vmatprep.subr.mxu0 0.0
        %656 = vmatpush1.msra.mxu0 0.0
        %657 = vmatprep.subr.mxu0 0.0
        %658 = vmatpush1.msra.mxu0 0.0
        %659 = vmatprep.subr.mxu0 0.0
        %660 = vmatpush1.msra.mxu0 0.0
        %661 = vmatprep.subr.mxu0 0.0
        %662 = vmatpush1.msra.mxu0 0.0
        %663 = vmatprep.subr.mxu0 0.0
        %664 = vmatpush1.msra.mxu0 0.0
        %665 = vmatprep.subr.mxu0 0.0
        %666 = vmatpush1.msra.mxu0 0.0
        %667 = vmatprep.subr.mxu0 0.0
        %668 = vmatpush1.msra.mxu0 0.0
        %669 = vmatprep.subr.mxu0 0.0
        %670 = vmatpush1.msra.mxu0 0.0
        %671 = vmatprep.subr.mxu0 0.0
        %672 = vmatpush1.msra.mxu0 0.0
        %673 = vmatprep.subr.mxu0 0.0
        %674 = vmatpush1.msra.mxu0 0.0
        %675 = vmatprep.subr.mxu0 0.0
        %676 = vmatpush1.msra.mxu0 0.0
        %677 = vmatprep.subr.mxu0 0.0
        %678 = vmatpush1.msra.mxu0 0.0
        %679 = vmatprep.subr.mxu0 0.0
        %680 = vmatpush1.msra.mxu0 0.0
        %681 = vmatprep.subr.mxu0 0.0
        %682 = vmatpush1.msra.mxu0 0.0
        %683 = vmatprep.subr.mxu0 0.0
        %684 = vmatpush1.msra.mxu0 0.0
        %685 = vmatprep.subr.mxu0 0.0
        %686 = vmatpush1.msra.mxu0 0.0
        %687 = vmatprep.subr.mxu0 0.0
        %688 = vmatpush1.msra.mxu0 0.0
        %689 = vmatprep.subr.mxu0 0.0
        %690 = vmatpush1.msra.mxu0 0.0
        %691 = vmatprep.subr.mxu0 0.0
        %692 = vmatpush1.msra.mxu0 0.0
        %693 = vmatprep.subr.mxu0 0.0
        %694 = vmatpush1.msra.mxu0 0.0
        %695 = vmatprep.subr.mxu0 0.0
        %696 = vmatpush1.msra.mxu0 0.0
        %697 = vmatprep.subr.mxu0 0.0
        %698 = vmatpush1.msra.mxu0 0.0
        %699 = vmatprep.subr.mxu0 0.0
        %700 = vmatpush1.msra.mxu0 0.0
        %701 = vmatprep.subr.mxu0 0.0
        %702 = vmatpush1.msra.mxu0 0.0
        %703 = vmatprep.subr.mxu0 0.0
        %704 = vmatpush1.msra.mxu0 0.0
        %705 = vmatprep.subr.mxu0 0.0
        %706 = vmatpush1.msra.mxu0 0.0
        %707 = vmatprep.subr.mxu0 0.0
        %708 = vmatpush1.msra.mxu0 0.0
        %709 = vmatprep.mubr.f32.mxu0 0.0
        %710 = vmatmul.mubr.f32.gmra.mrb[0].mxu0 %v640
        %v711 = vpop.f32.mrb[0].mxu0
        %v712 = vadd.f32 0.0, %v711
        %v713 = vpop.f32.mrb[0].mxu0
        %714 = vmatprep.mubr.f32.mxu0 0.0
        %715 = vmatmul.mubr.f32.gmra.mrb[0].mxu0 %v643
        %v716 = vpop.f32.mrb[0].mxu0
        %v717 = vadd.f32 0.0, %v716
        %v718 = vpop.f32.mrb[0].mxu0
        %719 = vdwg.mxu0
        %v721 = vsel %vm474, %v712, 0
        %v724 = vsel %vm474, %v717, 0
        %726 = vmatprep.subr.mxu0 0.0
        %727 = vmatpush1.msra.mxu0 %v299
        %728 = vmatprep.subr.mxu0 0.0
        %729 = vmatpush1.msra.mxu0 %v300
        %730 = vmatprep.subr.mxu0 0.0
        %731 = vmatpush1.msra.mxu0 %v301
        %732 = vmatprep.subr.mxu0 0.0
        %733 = vmatpush1.msra.mxu0 %v302
        %734 = vmatprep.subr.mxu0 0.0
        %735 = vmatpush1.msra.mxu0 0.0
        %736 = vmatprep.subr.mxu0 0.0
        %737 = vmatpush1.msra.mxu0 0.0
        %738 = vmatprep.subr.mxu0 0.0
        %739 = vmatpush1.msra.mxu0 0.0
        %740 = vmatprep.subr.mxu0 0.0
        %741 = vmatpush1.msra.mxu0 0.0
        %742 = vmatprep.subr.mxu0 0.0
        %743 = vmatpush1.msra.mxu0 0.0
        %744 = vmatprep.subr.mxu0 0.0
        %745 = vmatpush1.msra.mxu0 0.0
        %746 = vmatprep.subr.mxu0 0.0
        %747 = vmatpush1.msra.mxu0 0.0
        %748 = vmatprep.subr.mxu0 0.0
        %749 = vmatpush1.msra.mxu0 0.0
        %750 = vmatprep.subr.mxu0 0.0
        %751 = vmatpush1.msra.mxu0 0.0
        %752 = vmatprep.subr.mxu0 0.0
        %753 = vmatpush1.msra.mxu0 0.0
        %754 = vmatprep.subr.mxu0 0.0
        %755 = vmatpush1.msra.mxu0 0.0
        %756 = vmatprep.subr.mxu0 0.0
        %757 = vmatpush1.msra.mxu0 0.0
        %758 = vmatprep.subr.mxu0 0.0
        %759 = vmatpush1.msra.mxu0 0.0
        %760 = vmatprep.subr.mxu0 0.0
        %761 = vmatpush1.msra.mxu0 0.0
        %762 = vmatprep.subr.mxu0 0.0
        %763 = vmatpush1.msra.mxu0 0.0
        %764 = vmatprep.subr.mxu0 0.0
        %765 = vmatpush1.msra.mxu0 0.0
        %766 = vmatprep.subr.mxu0 0.0
        %767 = vmatpush1.msra.mxu0 0.0
        %768 = vmatprep.subr.mxu0 0.0
        %769 = vmatpush1.msra.mxu0 0.0
        %770 = vmatprep.subr.mxu0 0.0
        %771 = vmatpush1.msra.mxu0 0.0
        %772 = vmatprep.subr.mxu0 0.0
        %773 = vmatpush1.msra.mxu0 0.0
        %774 = vmatprep.subr.mxu0 0.0
        %775 = vmatpush1.msra.mxu0 0.0
        %776 = vmatprep.subr.mxu0 0.0
        %777 = vmatpush1.msra.mxu0 0.0
        %778 = vmatprep.subr.mxu0 0.0
        %779 = vmatpush1.msra.mxu0 0.0
        %780 = vmatprep.subr.mxu0 0.0
        %781 = vmatpush1.msra.mxu0 0.0
        %782 = vmatprep.subr.mxu0 0.0
        %783 = vmatpush1.msra.mxu0 0.0
        %784 = vmatprep.subr.mxu0 0.0
        %785 = vmatpush1.msra.mxu0 0.0
        %786 = vmatprep.subr.mxu0 0.0
        %787 = vmatpush1.msra.mxu0 0.0
        %788 = vmatprep.subr.mxu0 0.0
        %789 = vmatpush1.msra.mxu0 0.0
        %790 = vmatprep.mubr.f32.mxu0 0.0
        %791 = vmatmul.mubr.f32.gmra.mrb[0].mxu0 %v721
        %v792 = vpop.f32.mrb[0].mxu0
        %v793 = vadd.f32 0.0, %v792
        %v794 = vpop.f32.mrb[0].mxu0
        %795 = vmatprep.mubr.f32.mxu0 0.0
        %796 = vmatmul.mubr.f32.gmra.mrb[0].mxu0 %v724
        %v797 = vpop.f32.mrb[0].mxu0
        %v798 = vadd.f32 0.0, %v797
        %v799 = vpop.f32.mrb[0].mxu0
        %800 = vdwg.mxu0
        %v801 = vadd.f32 %v629, %v793
        %v802 = vadd.f32 %v634, %v798
        %v803 = vmax.f32 %v801, 0.0
        %v804 = vmax.f32 %v802, 0.0
        %vm805 = vcmask 523264
        %806 = vst.msk [vmem:[%s284] sm:$0xff] %vm805, %v803
        %807 = vst.msk [vmem:[%s284 + $0x8] sm:$0xff] %vm805, %v804
        %s808 = sand.u32 %s127, 1
        %s809 = scalar_lea.sflag [#allocation4], %s808
        %s810 = sand.u32 %s127, 1
        %s811 = smul.addr %s810, 16
        %s812 = scalar_lea.vmem [#allocation10], %s811
        // Predicated region
        $region53: #{tpu_custom_call.1} parent=35 // pred_check
          %p813 = pneg %p137
        $region54: #{tpu_custom_call.1} parent=35 // pred_check_branch
          %815 = sbr.rel (%p813) target = $region56
        $region55: #{tpu_custom_call.1} parent=35 // pred_region
          %s817 = ssub.s32 256, 256
          %818 = vsyncadd %s809, %s817
          %s819 = smul.addr %s25, 2
          %s820 = smul.addr %s819, 128
          %s821 = scalar_lea.hbm %s4, %s820
          %s822 = sshll.u32 %s812, 4
          %s823 = int_to_ptr.vmem [resolvable:$true] %s822
          %828 = dma.vmem_to_hbm [thread:$0]  %s823, 256, %s821, %s809, 128, 128, 8
        $region56: #{tpu_custom_call.1} parent=35 // pred_fallthru
          _
      $region36: #{tpu_custom_call.1} parent=5 // pred_fallthru
        _
      %p829 = scmp.le.s32.totalorder 2, %s20
      // Predicated region
      $region57: #{tpu_custom_call.1} parent=5 // pred_check
        %p830 = pneg %p829
      $region58: #{tpu_custom_call.1} parent=5 // pred_check_branch
        %832 = sbr.rel (%p830) target = $region60
      $region59: #{tpu_custom_call.1} parent=5 // pred_region
        %s833 = ssub.s32 %s20, 2
        // Predicated region
        $region61: #{tpu_custom_call.1} parent=59 // pred_check
          %p834 = pneg %p143
        $region62: #{tpu_custom_call.1} parent=59 // pred_check_branch
          %836 = sbr.rel (%p834) target = $region64
        $region63: #{tpu_custom_call.1} parent=59 // pred_region
          %s837 = sand.u32 %s128, 1
          %s838 = scalar_lea.sflag [#allocation4], %s837
          %s839 = sand.u32 %s128, 1
          %s840 = smul.addr %s839, 16
          %s841 = scalar_lea.vmem [#allocation10], %s840
          %842 = dma.done %s838, 256
        $region64: #{tpu_custom_call.1} parent=59 // pred_fallthru
          _
      $region60: #{tpu_custom_call.1} parent=5 // pred_fallthru
        _
    $region6: #{tpu_custom_call.1} parent=1 // loop_footer
      %s24 = sadd.s32 1, %s20
    $region7: #{tpu_custom_call.1} parent=1 // loop_footer_branch
      %19 = sbr.rel target = $region3
    $region8: #{tpu_custom_call.1} parent=1 // loop_exit
      _
    %843 = vsyncpa [#allocation3], 1
    %s844 = scalar_lea.sflag [#allocation3], 1
    %845 = vsyncpa %s844, 1
    %846 = vsyncpa [#allocation6], 1
    %s847 = scalar_lea.sflag [#allocation6], 1
    %848 = vsyncpa %s847, 1
    %849 = vsyncpa [#allocation9], 1
    %850 = vsyncpa [#allocation4], 1
    %s851 = scalar_lea.sflag [#allocation4], 1
    %852 = vsyncpa %s851, 1

</llo_original>
